<compile_context>
chip_gen: v7x
topology: tpu7x:2x2x1
jax: 0.10.0
libtpu: 0.0.40
codegen_flags: <defaults>
</compile_context>

<pallas_src>
import jax
import jax.numpy as jnp
from jax import lax
from jax.experimental import pallas as pl
from jax.experimental.pallas import tpu as pltpu


def _round_up(x, m):
    return (x + m - 1) // m * m


def _pad_to(x, shape):
    pads = [(0, t - s) for s, t in zip(x.shape, shape)]
    return jnp.pad(x, pads)


def _default_vmem_limit_bytes():
    # ~3/4 of physical VMEM, capped at 96 MiB: ~48 MiB on v7x (64 MiB phys),
    # 96 MiB on v5e/v6e (128 MiB phys).  Falls back to 48 MiB if unqueryable.
    try:
        cap = int(pltpu.get_tpu_info().vmem_capacity_bytes)
    except Exception:
        cap = 64 * 1024 * 1024
    return min(cap * 3 // 4, 96 * 1024 * 1024)


def custom_clip_kernel(scale_ref, x_ref, wimg_ref, pooled_ref, wtxt_ref,
                       logits_ref, acc_ref, txt_ref):
    k = pl.program_id(0)

    # ---- once, at the first F-tile: zero the accumulator and run the whole
    # (F-tile-independent) text branch into VMEM scratch ---------------------
    @pl.when(k == 0)
    def _():
        acc_ref[...] = jnp.zeros_like(acc_ref)
        # Prompts are already sum-pooled over L in the wrapper (mean's 1/L
        # cancels under L2 normalization).  Single bf16 MXU matmul, f32 acc.
        txt = jnp.dot(pooled_ref[...], wtxt_ref[...],
                      preferred_element_type=jnp.float32)          # (NCLSP, DP)
        txt = txt * lax.rsqrt(
            jnp.sum(txt * txt, axis=-1, keepdims=True) + 1e-12)
        # Cache normalized text features as bf16, pre-transposed to (DP,
        # NCLSP): the final logits matmul becomes a plain NN bf16 MXU pass and
        # the transpose is hidden under the w_img K-stream.
        txt_ref[...] = txt.astype(jnp.bfloat16).T

    # ---- K-tiled image projection: bf16 MXU matmul, f32 accumulation -------
    acc_ref[...] += jnp.dot(x_ref[...], wimg_ref[...],
                            preferred_element_type=jnp.float32)    # (BP, DP)

    # ---- last F-tile: L2-normalize and emit scaled, lane-dense logits ------
    @pl.when(k == pl.num_programs(0) - 1)
    def _():
        img = acc_ref[...]
        img = img * lax.rsqrt(
            jnp.sum(img * img, axis=-1, keepdims=True) + 1e-12)
        scale = jnp.exp(scale_ref[0])
        logits_ref[...] = scale * jnp.dot(
            img.astype(jnp.bfloat16), txt_ref[...],
            preferred_element_type=jnp.float32)                    # (BP, NCLSP)


def prepare_custom_clip(w_img, prompts, w_txt, logit_scale, *, f_tile=4096):
    """One-time (model-init) parameter preparation.

    Casts weights to bf16, pads them to lane/sublane-aligned shapes and pools
    the prompts over the sequence dim, so none of this HBM traffic recurs on
    the per-forward path (the kernel is w_img-stream bound).
    """
    F, D = w_img.shape
    NCLS, L, CTX = prompts.shape

    DP = _round_up(D, 128)                 # lane-aligned feature dim
    CTXP = _round_up(CTX, 128)
    NCLSP = _round_up(NCLS, 128)           # lane-dense output (unmasked vst)

    # F-tiling: derive from round_up(F, 128) and balance across nk steps so at
    # most ~nk*128 zero rows of w_img are padded/streamed (not up to tk-1).
    FP128 = _round_up(F, 128)
    tk_cap = max(128, min(_round_up(f_tile, 128), FP128))
    nk = -(-FP128 // tk_cap)
    tk = _round_up(-(-FP128 // nk), 128)
    FP = nk * tk

    wi = _pad_to(w_img.astype(jnp.bfloat16), (FP, DP))
    # Sum-pool over L in f32, then cast to bf16 (mean's 1/L cancels under the
    # L2 normalization inside the kernel).
    pooled = jnp.sum(prompts.astype(jnp.float32), axis=1)          # (NCLS, CTX)
    pooled = _pad_to(pooled.astype(jnp.bfloat16), (NCLSP, CTXP))
    wt = _pad_to(w_txt.astype(jnp.bfloat16), (CTXP, DP))
    scale = jnp.asarray(logit_scale, jnp.float32).reshape(1)

    return {
        "wi": wi, "pooled": pooled, "wt": wt, "scale": scale,
        "dims": dict(F=F, D=D, NCLS=NCLS, DP=DP, CTXP=CTXP, NCLSP=NCLSP,
                     FP=FP, tk=tk, nk=nk),
        "vmem_limit": _default_vmem_limit_bytes(),
    }


def custom_clip_forward(image_nchw, params):
    """image_nchw: (B, C, H, W). Returns logits (B, NCLS) in float32."""
    d = params["dims"]
    B = image_nchw.shape[0]
    x_flat = image_nchw.reshape(B, -1)
    assert x_flat.shape[1] == d["F"], "image C*H*W must match w_img rows"

    # bf16 sublane packing: pad batch to a multiple of 16.  Padded rows are
    # zero -> zero logits -> sliced away below.
    BP = _round_up(max(B, 16), 16)
    x = _pad_to(x_flat.astype(jnp.bfloat16), (BP, d["FP"]))

    tk, nk = d["tk"], d["nk"]
    DP, CTXP, NCLSP = d["DP"], d["CTXP"], d["NCLSP"]

    logits_pad = pl.pallas_call(
        custom_clip_kernel,
        out_shape=jax.ShapeDtypeStruct((BP, NCLSP), jnp.float32),
        grid_spec=pltpu.PrefetchScalarGridSpec(
            num_scalar_prefetch=0,
            grid=(nk,),
            in_specs=[
                # logit_scale: tiny scalar, whole array in SMEM.
                pl.BlockSpec(memory_space=pltpu.MemorySpace.SMEM),
                # image pixels: (BP, tk) tile marching along F.
                pl.BlockSpec((BP, tk), lambda k: (0, k)),
                # image projection weights: (tk, DP) tile marching along F.
                pl.BlockSpec((tk, DP), lambda k: (k, 0)),
                # pooled prompts / text weights: constant block index ->
                # fetched once (small after pooling, ~1-2 MiB at real shapes).
                pl.BlockSpec((NCLSP, CTXP), lambda k: (0, 0)),
                pl.BlockSpec((CTXP, DP), lambda k: (0, 0)),
            ],
            # Output block is resident across the reduction axis; written only
            # on the final grid step.
            out_specs=pl.BlockSpec((BP, NCLSP), lambda k: (0, 0)),
            scratch_shapes=[
                pltpu.VMEM((BP, DP), jnp.float32),       # image-feature acc
                pltpu.VMEM((DP, NCLSP), jnp.bfloat16),   # text feats (bf16, T)
            ],
        ),
        compiler_params=pltpu.CompilerParams(
            # Single grid axis is the F reduction -> "arbitrary".
            # TODO(synk): for large B, tile the batch and add a leading
            # "parallel" axis so v7x's two TensorCores split it.
            dimension_semantics=("arbitrary",),
            vmem_limit_bytes=params["vmem_limit"],
        ),
    )(params["scale"], x, params["wi"], params["pooled"], params["wt"])

    return logits_pad[:B, :d["NCLS"]]


if __name__ == "__main__":
    # Small, deterministic shapes consistent with the module's forward:
    B, C, H, W = 2, 4, 16, 16          # image batch (NCHW)
    NCLS = 8                           # number of classnames / prompts
    L = 8                              # prompt sequence length
    CTX = 128                          # prompt embedding width
    D = 128                            # shared CLIP feature dim
    F = C * H * W                      # 1024

    key = jax.random.PRNGKey(0)
    k_img, k_wimg, k_prompts, k_wtxt = jax.random.split(key, 4)

    image = jax.random.normal(k_img, (B, C, H, W), dtype=jnp.float32)
    w_img = (jax.random.normal(k_wimg, (F, D), dtype=jnp.float32)
             * (1.0 / jnp.sqrt(F)))
    prompts = jax.random.normal(k_prompts, (NCLS, L, CTX), dtype=jnp.float32)
    w_txt = (jax.random.normal(k_wtxt, (CTX, D), dtype=jnp.float32)
             * (1.0 / jnp.sqrt(CTX)))
    # CLIP's logit_scale parameter is initialized to ln(1/0.07).
    logit_scale = jnp.array([jnp.log(1.0 / 0.07)], dtype=jnp.float32)

    # One-time model-init preparation (cast/pad/pool hoisted off the per-call
    # path).  f_tile=512 -> 2 K-steps even at this toy F, exercising the
    # pipelined reduction; real shapes use the default 4096.
    params = prepare_custom_clip(w_img, prompts, w_txt, logit_scale,
                                 f_tile=512)

    logits = custom_clip_forward(image, params)
    jax.block_until_ready(logits)

    # Pure-JAX reference mirroring the kernel's math (bf16 matmul inputs, f32
    # accumulation; sum-pool == mean-pool under L2 norm; bf16 normalized
    # features feeding the final logits matmul).
    xb = image.reshape(B, -1).astype(jnp.bfloat16)
    wib = w_img.astype(jnp.bfloat16)
    wtb = w_txt.astype(jnp.bfloat16)
    pooled = jnp.sum(prompts, axis=1).astype(jnp.bfloat16)

    img_f = jnp.dot(xb, wib, preferred_element_type=jnp.float32)
    txt_f = jnp.dot(pooled, wtb, preferred_element_type=jnp.float32)
    img_n = img_f * lax.rsqrt(jnp.sum(img_f * img_f, -1, keepdims=True) + 1e-12)
    txt_n = txt_f * lax.rsqrt(jnp.sum(txt_f * txt_f, -1, keepdims=True) + 1e-12)
    ref = jnp.exp(logit_scale[0]) * jnp.dot(
        img_n.astype(jnp.bfloat16), txt_n.astype(jnp.bfloat16).T,
        preferred_element_type=jnp.float32)

    assert logits.shape == (B, NCLS)
    assert jnp.allclose(logits, ref, atol=1e-2, rtol=1e-2)

    print("KERNEL_OK")
</pallas_src>

<mosaic_0001>
module attributes {stable_mosaic.version = 11 : i64} {
  func.func @custom_clip_kernel(%arg0: i32, %arg1: memref<1xf32, #tpu.memory_space<smem>>, %arg2: memref<16x512xbf16, #tpu.memory_space<vmem>>, %arg3: memref<512x128xbf16, #tpu.memory_space<vmem>>, %arg4: memref<128x128xbf16, #tpu.memory_space<vmem>>, %arg5: memref<128x128xbf16, #tpu.memory_space<vmem>>, %arg6: memref<16x128xf32, #tpu.memory_space<vmem>>, %arg7: memref<16x128xf32, #tpu.memory_space<vmem>>, %arg8: memref<128x128xbf16, #tpu.memory_space<vmem>>) attributes {dimension_semantics = [#tpu.dimension_semantics<arbitrary>], iteration_bounds = array<i64: 2>, scalar_prefetch = 0 : i64, scratch_operands = 2 : i64, tpu.core_type = #tpu.core_type<tc>, window_params = [{transform_indices = @transform_0, window_bounds = array<i64: 1>}, {transform_indices = @transform_1, window_bounds = array<i64: 16, 512>}, {transform_indices = @transform_2, window_bounds = array<i64: 512, 128>}, {pipeline_mode = #tpu.pipeline_mode<synchronous>, transform_indices = @transform_3, window_bounds = array<i64: 128, 128>}, {pipeline_mode = #tpu.pipeline_mode<synchronous>, transform_indices = @transform_4, window_bounds = array<i64: 128, 128>}, {pipeline_mode = #tpu.pipeline_mode<synchronous>, transform_indices = @transform_5, window_bounds = array<i64: 16, 128>}]} {
    %c0_i32 = arith.constant 0 : i32
    %0 = arith.cmpi eq, %arg0, %c0_i32 : i32
    %1 = arith.extui %0 : i1 to i32
    %c0_i32_0 = arith.constant 0 : i32
    %2 = arith.cmpi ne, %1, %c0_i32_0 : i32
    scf.if %2 {
      %cst_9 = arith.constant 0.000000e+00 : f32
      %12 = vector.broadcast %cst_9 : f32 to vector<16x128xf32>
      %c0_10 = arith.constant 0 : index
      %c0_11 = arith.constant 0 : index
      %13 = vector.load %arg7[%c0_10, %c0_11] : memref<16x128xf32, #tpu.memory_space<vmem>>, vector<16x128xf32>
      tpu.vector_store %arg7[%c0_10, %c0_11], %12 {strides = array<i32>} : memref<16x128xf32, #tpu.memory_space<vmem>>, vector<16x128xf32>,
      %c0_12 = arith.constant 0 : index
      %c0_13 = arith.constant 0 : index
      %14 = vector.load %arg4[%c0_12, %c0_13] : memref<128x128xbf16, #tpu.memory_space<vmem>>, vector<128x128xbf16>
      %c0_14 = arith.constant 0 : index
      %c0_15 = arith.constant 0 : index
      %15 = vector.load %arg5[%c0_14, %c0_15] : memref<128x128xbf16, #tpu.memory_space<vmem>>, vector<128x128xbf16>
      %cst_16 = arith.constant dense<0.000000e+00> : vector<128x128xf32>
      %16 = tpu.matmul %14, %15, %cst_16 {dimension_numbers = #tpu.dot_dimension_numbers<[1], [0], [0], [1], [0, 0, 1, 1], [], []>} : vector<128x128xbf16>, vector<128x128xbf16>, vector<128x128xf32> -> vector<128x128xf32>
      %17 = arith.mulf %16, %16 : vector<128x128xf32>
      %cst_17 = arith.constant dense<0.000000e+00> : vector<128xf32>
      %18 = vector.multi_reduction <add>, %17, %cst_17 [1] : vector<128x128xf32> to vector<128xf32>
      %19 = vector.shape_cast %18 : vector<128xf32> to vector<128x1xf32>
      %cst_18 = arith.constant 9.99999996E-13 : f32
      %20 = vector.broadcast %cst_18 : f32 to vector<128x1xf32>
      %21 = arith.addf %19, %20 : vector<128x1xf32>
      %22 = math.rsqrt %21 : vector<128x1xf32>
      %23 = vector.broadcast %22 : vector<128x1xf32> to vector<128x128xf32>
      %24 = arith.mulf %16, %23 : vector<128x128xf32>
      %25 = arith.truncf %24 : vector<128x128xf32> to vector<128x128xbf16>
      %26 = tpu.transpose %25, [1, 0] : vector<128x128xbf16> -> vector<128x128xbf16>
      %c0_19 = arith.constant 0 : index
      %c0_20 = arith.constant 0 : index
      %27 = vector.load %arg8[%c0_19, %c0_20] : memref<128x128xbf16, #tpu.memory_space<vmem>>, vector<128x128xbf16>
      tpu.vector_store %arg8[%c0_19, %c0_20], %26 {strides = array<i32>} : memref<128x128xbf16, #tpu.memory_space<vmem>>, vector<128x128xbf16>,
    } else {
    }
    %c0 = arith.constant 0 : index
    %c0_1 = arith.constant 0 : index
    %3 = vector.load %arg7[%c0, %c0_1] : memref<16x128xf32, #tpu.memory_space<vmem>>, vector<16x128xf32>
    %c0_2 = arith.constant 0 : index
    %c0_3 = arith.constant 0 : index
    %4 = vector.load %arg2[%c0_2, %c0_3] : memref<16x512xbf16, #tpu.memory_space<vmem>>, vector<16x512xbf16>
    %c0_4 = arith.constant 0 : index
    %c0_5 = arith.constant 0 : index
    %5 = vector.load %arg3[%c0_4, %c0_5] : memref<512x128xbf16, #tpu.memory_space<vmem>>, vector<512x128xbf16>
    %cst = arith.constant dense<0.000000e+00> : vector<16x128xf32>
    %6 = tpu.matmul %4, %5, %cst {dimension_numbers = #tpu.dot_dimension_numbers<[1], [0], [0], [1], [0, 0, 1, 1], [], []>} : vector<16x512xbf16>, vector<512x128xbf16>, vector<16x128xf32> -> vector<16x128xf32>
    %7 = arith.addf %3, %6 : vector<16x128xf32>
    %c0_6 = arith.constant 0 : index
    %c0_7 = arith.constant 0 : index
    %8 = vector.load %arg7[%c0_6, %c0_7] : memref<16x128xf32, #tpu.memory_space<vmem>>, vector<16x128xf32>
    tpu.vector_store %arg7[%c0_6, %c0_7], %7 {strides = array<i32>} : memref<16x128xf32, #tpu.memory_space<vmem>>, vector<16x128xf32>,
    %c1_i32 = arith.constant 1 : i32
    %9 = arith.cmpi eq, %arg0, %c1_i32 : i32
    %10 = arith.extui %9 : i1 to i32
    %c0_i32_8 = arith.constant 0 : i32
    %11 = arith.cmpi ne, %10, %c0_i32_8 : i32
    scf.if %11 {
      %c0_9 = arith.constant 0 : index
      %c0_10 = arith.constant 0 : index
      %12 = vector.load %arg7[%c0_9, %c0_10] : memref<16x128xf32, #tpu.memory_space<vmem>>, vector<16x128xf32>
      %13 = arith.mulf %12, %12 : vector<16x128xf32>
      %cst_11 = arith.constant dense<0.000000e+00> : vector<16xf32>
      %14 = vector.multi_reduction <add>, %13, %cst_11 [1] : vector<16x128xf32> to vector<16xf32>
      %15 = vector.shape_cast %14 : vector<16xf32> to vector<16x1xf32>
      %cst_12 = arith.constant 9.99999996E-13 : f32
      %16 = vector.broadcast %cst_12 : f32 to vector<16x1xf32>
      %17 = arith.addf %15, %16 : vector<16x1xf32>
      %18 = math.rsqrt %17 : vector<16x1xf32>
      %19 = vector.broadcast %18 : vector<16x1xf32> to vector<16x128xf32>
      %20 = arith.mulf %12, %19 : vector<16x128xf32>
      %c0_13 = arith.constant 0 : index
      %21 = memref.load %arg1[%c0_13] : memref<1xf32, #tpu.memory_space<smem>>
      %22 = math.exp %21 : f32
      %23 = arith.truncf %20 : vector<16x128xf32> to vector<16x128xbf16>
      %c0_14 = arith.constant 0 : index
      %c0_15 = arith.constant 0 : index
      %24 = vector.load %arg8[%c0_14, %c0_15] : memref<128x128xbf16, #tpu.memory_space<vmem>>, vector<128x128xbf16>
      %cst_16 = arith.constant dense<0.000000e+00> : vector<16x128xf32>
      %25 = tpu.matmul %23, %24, %cst_16 {dimension_numbers = #tpu.dot_dimension_numbers<[1], [0], [0], [1], [0, 0, 1, 1], [], []>} : vector<16x128xbf16>, vector<128x128xbf16>, vector<16x128xf32> -> vector<16x128xf32>
      %26 = vector.broadcast %22 : f32 to vector<16x128xf32>
      %27 = arith.mulf %26, %25 : vector<16x128xf32>
      %c0_17 = arith.constant 0 : index
      %c0_18 = arith.constant 0 : index
      %28 = vector.load %arg6[%c0_17, %c0_18] : memref<16x128xf32, #tpu.memory_space<vmem>>, vector<16x128xf32>
      tpu.vector_store %arg6[%c0_17, %c0_18], %27 {strides = array<i32>} : memref<16x128xf32, #tpu.memory_space<vmem>>, vector<16x128xf32>,
    } else {
    }
    return
  }
  func.func @transform_0(%arg0: i32) -> i32 {
    %c0_i32 = arith.constant 0 : i32
    %c0_i32_0 = arith.constant 0 : i32
    return %c0_i32 : i32
  }
  func.func @transform_1(%arg0: i32) -> (i32, i32) {
    %c0_i32 = arith.constant 0 : i32
    %c0_i32_0 = arith.constant 0 : i32
    return %c0_i32, %arg0 : i32, i32
  }
  func.func @transform_2(%arg0: i32) -> (i32, i32) {
    %c0_i32 = arith.constant 0 : i32
    %c0_i32_0 = arith.constant 0 : i32
    return %arg0, %c0_i32 : i32, i32
  }
  func.func @transform_3(%arg0: i32) -> (i32, i32) {
    %c0_i32 = arith.constant 0 : i32
    %c0_i32_0 = arith.constant 0 : i32
    %c0_i32_1 = arith.constant 0 : i32
    return %c0_i32, %c0_i32_0 : i32, i32
  }
  func.func @transform_4(%arg0: i32) -> (i32, i32) {
    %c0_i32 = arith.constant 0 : i32
    %c0_i32_0 = arith.constant 0 : i32
    %c0_i32_1 = arith.constant 0 : i32
    return %c0_i32, %c0_i32_0 : i32, i32
  }
  func.func @transform_5(%arg0: i32) -> (i32, i32) {
    %c0_i32 = arith.constant 0 : i32
    %c0_i32_0 = arith.constant 0 : i32
    %c0_i32_1 = arith.constant 0 : i32
    return %c0_i32, %c0_i32_0 : i32, i32
  }
}

</mosaic_0001>

<llo_original>
// kernel: tpu_custom_call.1
$region0: #{tpu_custom_call.1}
  #allocation0 [shape = 'u32[]', space=smem, size = 0x4, offset = 0x4, fixed_abs, tag = 'smem constant byte address 0x4 - core index']
  #allocation1 [shape = 'u32[144,128]{1,0:T(1,128)}', space=vmem, size = 0x12000, scoped, tag = 'internal scratch']
  #allocation2 [shape = 'f32[16,128]{1,0:T(8,128)}', space=vmem, size = 0x2000, scoped, tag = 'scratch operand']
  #allocation3 [shape = 'bf16[128,128]{1,0:T(16,128)(2,1)}', space=vmem, size = 0x8000, scoped, tag = 'scratch operand']
  #allocation4 [shape = 'f32[1]{0:T(128)S(6)}', space=smem, size = 0x200, scoped, tag = 'scoped memory for tpu_custom_call.1']
  %s0 = inlined_call_operand.<no memory space> [shape: f32[1], index: 0, kind: input, shape index: {}]
  %s1 = inlined_call_operand.hbm [shape: bf16[16,1024], index: 1, kind: input, shape index: {}]
  %s2 = inlined_call_operand.hbm [shape: bf16[1024,128], index: 2, kind: input, shape index: {}]
  %s3 = inlined_call_operand.hbm [shape: bf16[128,128], index: 3, kind: input, shape index: {}]
  %s4 = inlined_call_operand.hbm [shape: bf16[128,128], index: 4, kind: input, shape index: {}]
  %s5 = inlined_call_operand.hbm [shape: f32[16,128], index: 5, kind: output, shape index: {}]
  %s6 = sld [smem:[#allocation0]]
  $region77: #{tpu_custom_call.1} parent=0
    _
  %s8 = ssub.s32 1, %s6
  %s9 = scalar_select 0, %s8, %s6
  %10 = sst [smem:[#allocation4]] %s0
  $region1: #{tpu_custom_call.1} parent=0
    #allocation5 [shape = 'u8[32768]{0}', space=vmem, size = 0x8000, scoped, tag = 'input window, operand 1']
    #allocation6 [shape = 's32[2]{0}', space=sflag, size = 0x8, scoped, tag = 'scoped memory for tpu_custom_call.1']
    #allocation7 [shape = 's32[2]{0}', space=sflag, size = 0x8, scoped, tag = 'scoped memory for tpu_custom_call.1']
    #allocation8 [shape = 'u8[262144]{0}', space=vmem, size = 0x40000, scoped, tag = 'input window, operand 2']
    #allocation9 [shape = 's32[2]{0}', space=sflag, size = 0x8, scoped, tag = 'scoped memory for tpu_custom_call.1']
    #allocation10 [shape = 'u8[32768]{0}', space=vmem, size = 0x8000, scoped, tag = 'input window, operand 3, single buffered']
    #allocation11 [shape = 'u8[32768]{0}', space=vmem, size = 0x8000, scoped, tag = 'input window, operand 4, single buffered']
    #allocation12 [shape = 's32[1]{0}', space=sflag, size = 0x4, scoped, tag = 'scoped memory for tpu_custom_call.1']
    #allocation13 [shape = 'u8[8192]{0}', space=vmem, size = 0x2000, scoped, tag = 'output window, operand 0, single buffered']
    %11 = vsyncpa [#allocation6], 0
    %s12 = scalar_lea.sflag [#allocation6], 1
    %13 = vsyncpa %s12, 0
    %14 = vsyncpa [#allocation9], 0
    %s15 = scalar_lea.sflag [#allocation9], 1
    %16 = vsyncpa %s15, 0
    %17 = vsyncpa [#allocation12], 0
    %18 = vsyncpa [#allocation7], 0
    loop: start=0, step=1, limit=4
    $region2: #{tpu_custom_call.1} parent=1 // loop_pre_header
      _
    $region3: #{tpu_custom_call.1} parent=1 // loop_header
      %s20 = sphi 0, %s24
      %p21 = scmp.ge.s32.totalorder %s20, 4
      %s28 = sphi 0, %s28
      %s30 = sphi 0, %s28
      %s31 = sphi 0, %s30
      %s45 = sphi 0, %s31
      %s51 = sphi 0, %s53
      %s54 = sphi 0, %s51
      %s55 = sphi 0, %s54
      %s71 = sphi 0, %s55
      %s77 = sphi 0, %s79
      %s80 = sphi 0, %s77
      %s81 = sphi 0, %s80
      %s97 = sphi 0, %s81
      %s101 = sphi 0, %s101
      %s103 = sphi 0, %s101
      %s104 = sphi 0, %s103
      %s118 = sphi 0, %s104
      %s122 = sphi 0, %s122
      %s124 = sphi 0, %s122
      %s125 = sphi 0, %s124
      %s139 = sphi 0, %s125
      %s143 = sphi 0, %s143
      %s145 = sphi 0, %s143
      %s146 = sphi 0, %s145
      %s160 = sphi 0, %s146
    $region4: #{tpu_custom_call.1} parent=1 // loop_header_branch
      %23 = sbr.rel (%p21) target = $region8
    $region5: #{tpu_custom_call.1} parent=1 // loop_body
      %s25 = ssub.s32 %s20, 1
      %s26 = ssub.s32 %s20, 2
      %s27 = sadd.s32 %s20, 1
      %s29 = sadd.s32 %s28, 1
      %p32 = scmp.eq.s32.totalorder %s20, 1
      %p33 = scmp.ne.s32.totalorder %s28, %s30
      %p34 = scmp.eq.s32.totalorder %s20, 0
      %p35 = por %p33, %p34
      %p36 = scmp.ne.s32.totalorder %s28, %s30
      %p37 = scmp.eq.s32.totalorder %s25, 1
      %p38 = por %p36, %p37
      %p39 = scmp.ne.s32.totalorder %s30, %s31
      %p40 = scmp.eq.s32.totalorder %s25, 0
      %p41 = por %p39, %p40
      %p42 = scmp.ne.s32.totalorder %s30, %s31
      %p43 = scmp.eq.s32.totalorder %s26, 1
      %p44 = por %p42, %p43
      %p46 = scmp.ne.s32.totalorder %s31, %s45
      %p47 = scmp.eq.s32.totalorder %s26, 0
      %p48 = por %p46, %p47
      %s49 = ssub.s32 %s20, %s27
      %p50 = scmp.eq.s32.totalorder %s49, 0
      %s52 = sadd.s32 %s51, 1
      %s53 = scalar_select %p50, %s51, %s52
      %p56 = pneg %p50
      %p57 = scmp.eq.s32.totalorder %s20, 1
      %p58 = por %p56, %p57
      %p59 = scmp.ne.s32.totalorder %s51, %s54
      %p60 = scmp.eq.s32.totalorder %s20, 0
      %p61 = por %p59, %p60
      %p62 = scmp.ne.s32.totalorder %s51, %s54
      %p63 = scmp.eq.s32.totalorder %s25, 1
      %p64 = por %p62, %p63
      %p65 = scmp.ne.s32.totalorder %s54, %s55
      %p66 = scmp.eq.s32.totalorder %s25, 0
      %p67 = por %p65, %p66
      %p68 = scmp.ne.s32.totalorder %s54, %s55
      %p69 = scmp.eq.s32.totalorder %s26, 1
      %p70 = por %p68, %p69
      %p72 = scmp.ne.s32.totalorder %s55, %s71
      %p73 = scmp.eq.s32.totalorder %s26, 0
      %p74 = por %p72, %p73
      %s75 = ssub.s32 %s20, %s27
      %p76 = scmp.eq.s32.totalorder %s75, 0
      %s78 = sadd.s32 %s77, 1
      %s79 = scalar_select %p76, %s77, %s78
      %p82 = pneg %p76
      %p83 = scmp.eq.s32.totalorder %s20, 1
      %p84 = por %p82, %p83
      %p85 = scmp.ne.s32.totalorder %s77, %s80
      %p86 = scmp.eq.s32.totalorder %s20, 0
      %p87 = por %p85, %p86
      %p88 = scmp.ne.s32.totalorder %s77, %s80
      %p89 = scmp.eq.s32.totalorder %s25, 1
      %p90 = por %p88, %p89
      %p91 = scmp.ne.s32.totalorder %s80, %s81
      %p92 = scmp.eq.s32.totalorder %s25, 0
      %p93 = por %p91, %p92
      %p94 = scmp.ne.s32.totalorder %s80, %s81
      %p95 = scmp.eq.s32.totalorder %s26, 1
      %p96 = por %p94, %p95
      %p98 = scmp.ne.s32.totalorder %s81, %s97
      %p99 = scmp.eq.s32.totalorder %s26, 0
      %p100 = por %p98, %p99
      %s102 = sadd.s32 %s101, 1
      %p105 = scmp.eq.s32.totalorder %s20, 1
      %p106 = scmp.ne.s32.totalorder %s101, %s103
      %p107 = scmp.eq.s32.totalorder %s20, 0
      %p108 = por %p106, %p107
      %p109 = scmp.ne.s32.totalorder %s101, %s103
      %p110 = scmp.eq.s32.totalorder %s25, 1
      %p111 = por %p109, %p110
      %p112 = scmp.ne.s32.totalorder %s103, %s104
      %p113 = scmp.eq.s32.totalorder %s25, 0
      %p114 = por %p112, %p113
      %p115 = scmp.ne.s32.totalorder %s103, %s104
      %p116 = scmp.eq.s32.totalorder %s26, 1
      %p117 = por %p115, %p116
      %p119 = scmp.ne.s32.totalorder %s104, %s118
      %p120 = scmp.eq.s32.totalorder %s26, 0
      %p121 = por %p119, %p120
      %s123 = sadd.s32 %s122, 1
      %p126 = scmp.eq.s32.totalorder %s20, 1
      %p127 = scmp.ne.s32.totalorder %s122, %s124
      %p128 = scmp.eq.s32.totalorder %s20, 0
      %p129 = por %p127, %p128
      %p130 = scmp.ne.s32.totalorder %s122, %s124
      %p131 = scmp.eq.s32.totalorder %s25, 1
      %p132 = por %p130, %p131
      %p133 = scmp.ne.s32.totalorder %s124, %s125
      %p134 = scmp.eq.s32.totalorder %s25, 0
      %p135 = por %p133, %p134
      %p136 = scmp.ne.s32.totalorder %s124, %s125
      %p137 = scmp.eq.s32.totalorder %s26, 1
      %p138 = por %p136, %p137
      %p140 = scmp.ne.s32.totalorder %s125, %s139
      %p141 = scmp.eq.s32.totalorder %s26, 0
      %p142 = por %p140, %p141
      %s144 = sadd.s32 %s143, 1
      %p147 = scmp.eq.s32.totalorder %s20, 1
      %p148 = scmp.ne.s32.totalorder %s143, %s145
      %p149 = scmp.eq.s32.totalorder %s20, 0
      %p150 = por %p148, %p149
      %p151 = scmp.ne.s32.totalorder %s143, %s145
      %p152 = scmp.eq.s32.totalorder %s25, 1
      %p153 = por %p151, %p152
      %p154 = scmp.ne.s32.totalorder %s145, %s146
      %p155 = scmp.eq.s32.totalorder %s25, 0
      %p156 = por %p154, %p155
      %p157 = scmp.ne.s32.totalorder %s145, %s146
      %p158 = scmp.eq.s32.totalorder %s26, 1
      %p159 = por %p157, %p158
      %p161 = scmp.ne.s32.totalorder %s146, %s160
      %p162 = scmp.eq.s32.totalorder %s26, 0
      %p163 = por %p161, %p162
      %p164 = scmp.le.s32.totalorder 1, %s20
      %p165 = scmp.lt.s32.totalorder %s20, 3
      %p166 = pnand %p164, %p165
      %p167 = pneg %p166
      // Predicated region
      $region9: #{tpu_custom_call.1} parent=5 // pred_check
        _
      $region10: #{tpu_custom_call.1} parent=5 // pred_check_branch
        %169 = sbr.rel (%p166) target = $region12
      $region11: #{tpu_custom_call.1} parent=5 // pred_region
        %s170 = ssub.s32 %s20, 1
        // Predicated region
        $region13: #{tpu_custom_call.1} parent=11 // pred_check
          %p171 = pneg %p41
        $region14: #{tpu_custom_call.1} parent=11 // pred_check_branch
          %173 = sbr.rel (%p171) target = $region16
        $region15: #{tpu_custom_call.1} parent=11 // pred_region
          _
        $region16: #{tpu_custom_call.1} parent=11 // pred_fallthru
          _
        // Predicated region
        $region17: #{tpu_custom_call.1} parent=11 // pred_check
          %p174 = pneg %p114
        $region18: #{tpu_custom_call.1} parent=11 // pred_check_branch
          %176 = sbr.rel (%p174) target = $region20
        $region19: #{tpu_custom_call.1} parent=11 // pred_region
          %s178 = ssub.s32 1024, 1024
          %179 = vsyncadd [#allocation9], %s178
          %s180 = sshll.u32 [#allocation10], 4
          %s181 = int_to_ptr.vmem [resolvable:$true] %s180
          %186 = dma.hbm_to_vmem [thread:$0]  %s3, 1024, %s181, [#allocation9], 64, 64, 4
        $region20: #{tpu_custom_call.1} parent=11 // pred_fallthru
          _
        // Predicated region
        $region21: #{tpu_custom_call.1} parent=11 // pred_check
          %p187 = pneg %p135
        $region22: #{tpu_custom_call.1} parent=11 // pred_check_branch
          %189 = sbr.rel (%p187) target = $region24
        $region23: #{tpu_custom_call.1} parent=11 // pred_region
          %s191 = ssub.s32 1024, 1024
          %192 = vsyncadd [#allocation12], %s191
          %s193 = sshll.u32 [#allocation11], 4
          %s194 = int_to_ptr.vmem [resolvable:$true] %s193
          %199 = dma.hbm_to_vmem [thread:$0]  %s4, 1024, %s194, [#allocation12], 64, 64, 4
        $region24: #{tpu_custom_call.1} parent=11 // pred_fallthru
          _
      $region12: #{tpu_custom_call.1} parent=5 // pred_fallthru
        _
      %p200 = scmp.lt.s32.totalorder %s20, 2
      // Predicated region
      $region25: #{tpu_custom_call.1} parent=5 // pred_check
        %p201 = pneg %p200
      $region26: #{tpu_custom_call.1} parent=5 // pred_check_branch
        %203 = sbr.rel (%p201) target = $region28
      $region27: #{tpu_custom_call.1} parent=5 // pred_region
        // Predicated region
        $region29: #{tpu_custom_call.1} parent=27 // pred_check
          %p204 = pneg %p61
        $region30: #{tpu_custom_call.1} parent=27 // pred_check_branch
          %206 = sbr.rel (%p204) target = $region32
        $region31: #{tpu_custom_call.1} parent=27 // pred_region
          %s207 = sand.u32 %s51, 1
          %s208 = scalar_lea.sflag [#allocation6], %s207
          %s209 = sand.u32 %s51, 1
          %s210 = smul.addr %s209, 32
          %s211 = scalar_lea.vmem [#allocation5], %s210
          %s212 = smul.u32 4, %s20
          %s214 = ssub.s32 512, 512
          %215 = vsyncadd %s208, %s214
          %s216 = smul.addr %s212, 64
          %s217 = scalar_lea.hbm %s1, %s216
          %s218 = sshll.u32 %s211, 4
          %s219 = int_to_ptr.vmem [resolvable:$true] %s218
          %224 = dma.hbm_to_vmem [thread:$0]  %s217, 512, %s219, %s208, 512, 256, 16
        $region32: #{tpu_custom_call.1} parent=27 // pred_fallthru
          _
        // Predicated region
        $region33: #{tpu_custom_call.1} parent=27 // pred_check
          %p225 = pneg %p87
        $region34: #{tpu_custom_call.1} parent=27 // pred_check_branch
          %227 = sbr.rel (%p225) target = $region36
        $region35: #{tpu_custom_call.1} parent=27 // pred_region
          %s228 = sand.u32 %s20, 1
          %s229 = scalar_lea.sflag [#allocation9], %s228
          %s230 = sand.u32 %s77, 1
          %s231 = smul.addr %s230, 256
          %s232 = scalar_lea.vmem [#allocation8], %s231
          %s233 = smul.u32 64, %s20
          %s235 = ssub.s32 4096, 4096
          %236 = vsyncadd %s229, %s235
          %s237 = smul.addr %s233, 64
          %s238 = scalar_lea.hbm %s2, %s237
          %s239 = sshll.u32 %s232, 4
          %s240 = int_to_ptr.vmem [resolvable:$true] %s239
          %245 = dma.hbm_to_vmem [thread:$0]  %s238, 4096, %s240, %s229, 64, 64, 4
        $region36: #{tpu_custom_call.1} parent=27 // pred_fallthru
          _
      $region28: #{tpu_custom_call.1} parent=5 // pred_fallthru
        _
      %p246 = scmp.le.s32.totalorder 1, %s20
      %p247 = scmp.lt.s32.totalorder %s20, 3
      %p248 = pnand %p246, %p247
      %p249 = pneg %p248
      // Predicated region
      $region37: #{tpu_custom_call.1} parent=5 // pred_check
        _
      $region38: #{tpu_custom_call.1} parent=5 // pred_check_branch
        %251 = sbr.rel (%p248) target = $region40
      $region39: #{tpu_custom_call.1} parent=5 // pred_region
        %s252 = ssub.s32 %s20, 1
        %s253 = sand.u32 %s54, 1
        %s254 = scalar_lea.sflag [#allocation6], %s253
        %s255 = sand.u32 %s54, 1
        %s256 = smul.addr %s255, 32
        %s257 = scalar_lea.vmem [#allocation5], %s256
        // Predicated region
        $region41: #{tpu_custom_call.1} parent=39 // pred_check
          %p258 = pneg %p67
        $region42: #{tpu_custom_call.1} parent=39 // pred_check_branch
          %260 = sbr.rel (%p258) target = $region44
        $region43: #{tpu_custom_call.1} parent=39 // pred_region
          %261 = dma.done %s254, 512
        $region44: #{tpu_custom_call.1} parent=39 // pred_fallthru
          _
        %s262 = sand.u32 %s25, 1
        %s263 = scalar_lea.sflag [#allocation9], %s262
        %s264 = sand.u32 %s80, 1
        %s265 = smul.addr %s264, 256
        %s266 = scalar_lea.vmem [#allocation8], %s265
        // Predicated region
        $region45: #{tpu_custom_call.1} parent=39 // pred_check
          %p267 = pneg %p93
        $region46: #{tpu_custom_call.1} parent=39 // pred_check_branch
          %269 = sbr.rel (%p267) target = $region48
        $region47: #{tpu_custom_call.1} parent=39 // pred_region
          %270 = dma.done %s263, 4096
        $region48: #{tpu_custom_call.1} parent=39 // pred_fallthru
          _
        // Predicated region
        $region49: #{tpu_custom_call.1} parent=39 // pred_check
          %p271 = pneg %p114
        $region50: #{tpu_custom_call.1} parent=39 // pred_check_branch
          %273 = sbr.rel (%p271) target = $region52
        $region51: #{tpu_custom_call.1} parent=39 // pred_region
          %274 = dma.done [#allocation9], 1024
        $region52: #{tpu_custom_call.1} parent=39 // pred_fallthru
          _
        // Predicated region
        $region53: #{tpu_custom_call.1} parent=39 // pred_check
          %p275 = pneg %p135
        $region54: #{tpu_custom_call.1} parent=39 // pred_check_branch
          %277 = sbr.rel (%p275) target = $region56
        $region55: #{tpu_custom_call.1} parent=39 // pred_region
          %278 = dma.done [#allocation12], 1024
        $region56: #{tpu_custom_call.1} parent=39 // pred_fallthru
          _
        %p279 = pneg %p41
        %p280 = pneg %p38
        %s281 = sand.u32 %s54, 1
        %s282 = scalar_lea.sflag [#allocation6], %s281
        %s283 = sand.u32 %s54, 1
        %s284 = smul.addr %s283, 32
        %s285 = scalar_lea.vmem [#allocation5], %s284
        %p286 = pneg %p67
        %p287 = pneg %p64
        %s288 = sand.u32 %s25, 1
        %s289 = scalar_lea.sflag [#allocation9], %s288
        %s290 = sand.u32 %s80, 1
        %s291 = smul.addr %s290, 256
        %s292 = scalar_lea.vmem [#allocation8], %s291
        %p293 = pneg %p93
        %p294 = pneg %p90
        %p295 = pneg %p114
        %p296 = pneg %p111
        %p297 = pneg %p135
        %p298 = pneg %p132
        %p299 = pneg %p156
        %p300 = pneg %p153
        %s301 = smul.u32 4, %s25
        %s302 = smul.u32 64, %s25
        %p304 = scmp.eq.s32.totalorder %s25, 0
        // Predicated region
        $region57: #{tpu_custom_call.1} parent=39 // pred_check
          %p305 = pneg %p304
        $region58: #{tpu_custom_call.1} parent=39 // pred_check_branch
          %307 = sbr.rel (%p305) target = $region60
        $region59: #{tpu_custom_call.1} parent=39 // pred_region
          %308 = vst [vmem:[#allocation2] sm:$0xff] 0.0
          %309 = vst [vmem:[#allocation2 + $0x8] sm:$0xff] 0.0
          %v310 = vld [vmem:[#allocation10] sm:$0xf]
          %v311 = vld [vmem:[#allocation10 + $0x4] sm:$0xf]
          %v312 = vld [vmem:[#allocation10 + $0x8] sm:$0xf]
          %v313 = vld [vmem:[#allocation10 + $0xc] sm:$0xf]
          %v314 = vld [vmem:[#allocation10 + $0x10] sm:$0xf]
          %v315 = vld [vmem:[#allocation10 + $0x14] sm:$0xf]
          %v316 = vld [vmem:[#allocation10 + $0x18] sm:$0xf]
          %v317 = vld [vmem:[#allocation10 + $0x1c] sm:$0xf]
          %v318 = vld [vmem:[#allocation10 + $0x20] sm:$0xf]
          %v319 = vld [vmem:[#allocation10 + $0x24] sm:$0xf]
          %v320 = vld [vmem:[#allocation10 + $0x28] sm:$0xf]
          %v321 = vld [vmem:[#allocation10 + $0x2c] sm:$0xf]
          %v322 = vld [vmem:[#allocation10 + $0x30] sm:$0xf]
          %v323 = vld [vmem:[#allocation10 + $0x34] sm:$0xf]
          %v324 = vld [vmem:[#allocation10 + $0x38] sm:$0xf]
          %v325 = vld [vmem:[#allocation10 + $0x3c] sm:$0xf]
          %v326 = vld [vmem:[#allocation11] sm:$0xf]
          %v327 = vld [vmem:[#allocation11 + $0x4] sm:$0xf]
          %v328 = vld [vmem:[#allocation11 + $0x8] sm:$0xf]
          %v329 = vld [vmem:[#allocation11 + $0xc] sm:$0xf]
          %v330 = vld [vmem:[#allocation11 + $0x10] sm:$0xf]
          %v331 = vld [vmem:[#allocation11 + $0x14] sm:$0xf]
          %v332 = vld [vmem:[#allocation11 + $0x18] sm:$0xf]
          %v333 = vld [vmem:[#allocation11 + $0x1c] sm:$0xf]
          %v334 = vld [vmem:[#allocation11 + $0x20] sm:$0xf]
          %v335 = vld [vmem:[#allocation11 + $0x24] sm:$0xf]
          %v336 = vld [vmem:[#allocation11 + $0x28] sm:$0xf]
          %v337 = vld [vmem:[#allocation11 + $0x2c] sm:$0xf]
          %v338 = vld [vmem:[#allocation11 + $0x30] sm:$0xf]
          %v339 = vld [vmem:[#allocation11 + $0x34] sm:$0xf]
          %v340 = vld [vmem:[#allocation11 + $0x38] sm:$0xf]
          %v341 = vld [vmem:[#allocation11 + $0x3c] sm:$0xf]
          %v358 = vunpack.c.l.b16 %v310
          %v359 = vunpack.c.l.b16 %v311
          %v360 = vunpack.c.l.b16 %v312
          %v361 = vunpack.c.l.b16 %v313
          %v362 = vunpack.c.l.b16 %v314
          %v363 = vunpack.c.l.b16 %v315
          %v364 = vunpack.c.l.b16 %v316
          %v365 = vunpack.c.l.b16 %v317
          %v366 = vunpack.c.l.b16 %v318
          %v367 = vunpack.c.l.b16 %v319
          %v368 = vunpack.c.l.b16 %v320
          %v369 = vunpack.c.l.b16 %v321
          %v370 = vunpack.c.l.b16 %v322
          %v371 = vunpack.c.l.b16 %v323
          %v372 = vunpack.c.l.b16 %v324
          %v373 = vunpack.c.l.b16 %v325
          %v374 = vpack.c.b16 %v359, %v358
          %v375 = vpack.c.b16 %v361, %v360
          %v376 = vpack.c.b16 %v363, %v362
          %v377 = vpack.c.b16 %v365, %v364
          %v378 = vpack.c.b16 %v367, %v366
          %v379 = vpack.c.b16 %v369, %v368
          %v380 = vpack.c.b16 %v371, %v370
          %v381 = vpack.c.b16 %v373, %v372
          %v406 = vunpack.c.l.b16 %v326
          %v407 = vunpack.c.l.b16 %v327
          %v408 = vunpack.c.l.b16 %v328
          %v409 = vunpack.c.l.b16 %v329
          %v410 = vunpack.c.l.b16 %v330
          %v411 = vunpack.c.l.b16 %v331
          %v412 = vunpack.c.l.b16 %v332
          %v413 = vunpack.c.l.b16 %v333
          %v414 = vunpack.c.l.b16 %v334
          %v415 = vunpack.c.l.b16 %v335
          %v416 = vunpack.c.l.b16 %v336
          %v417 = vunpack.c.l.b16 %v337
          %v418 = vunpack.c.l.b16 %v338
          %v419 = vunpack.c.l.b16 %v339
          %v420 = vunpack.c.l.b16 %v340
          %v421 = vunpack.c.l.b16 %v341
          %v422 = vpack.c.b16 %v407, %v406
          %v423 = vpack.c.b16 %v409, %v408
          %v424 = vpack.c.b16 %v411, %v410
          %v425 = vpack.c.b16 %v413, %v412
          %v426 = vpack.c.b16 %v415, %v414
          %v427 = vpack.c.b16 %v417, %v416
          %v428 = vpack.c.b16 %v419, %v418
          %v429 = vpack.c.b16 %v421, %v420
          %438 = vmatprep.subr.bf16.mxu0 0
          %439 = vmatpush1.bf16.msra.mxu0 %v422
          %440 = vmatprep.subr.bf16.mxu0 0
          %441 = vmatpush1.bf16.msra.mxu0 %v423
          %442 = vmatprep.subr.bf16.mxu0 0
          %443 = vmatpush1.bf16.msra.mxu0 %v424
          %444 = vmatprep.subr.bf16.mxu0 0
          %445 = vmatpush1.bf16.msra.mxu0 %v425
          %446 = vmatprep.subr.bf16.mxu0 0
          %447 = vmatpush1.bf16.msra.mxu0 %v426
          %448 = vmatprep.subr.bf16.mxu0 0
          %449 = vmatpush1.bf16.msra.mxu0 %v427
          %450 = vmatprep.subr.bf16.mxu0 0
          %451 = vmatpush1.bf16.msra.mxu0 %v428
          %452 = vmatprep.subr.bf16.mxu0 0
          %453 = vmatpush1.bf16.msra.mxu0 %v429
          %454 = vmatprep.subr.bf16.mxu0 0
          %455 = vmatpush1.bf16.msra.mxu0 0
          %456 = vmatprep.subr.bf16.mxu0 0
          %457 = vmatpush1.bf16.msra.mxu0 0
          %458 = vmatprep.subr.bf16.mxu0 0
          %459 = vmatpush1.bf16.msra.mxu0 0
          %460 = vmatprep.subr.bf16.mxu0 0
          %461 = vmatpush1.bf16.msra.mxu0 0
          %462 = vmatprep.subr.bf16.mxu0 0
          %463 = vmatpush1.bf16.msra.mxu0 0
          %464 = vmatprep.subr.bf16.mxu0 0
          %465 = vmatpush1.bf16.msra.mxu0 0
          %466 = vmatprep.subr.bf16.mxu0 0
          %467 = vmatpush1.bf16.msra.mxu0 0
          %468 = vmatprep.subr.bf16.mxu0 0
          %469 = vmatpush1.bf16.msra.mxu0 0
          %470 = vmatprep.mubr.bf16.mxu0 0
          %471 = vmatmul.mubr.bf16.gmra.mrb[0].mxu0 %v374
          %v472 = vpop.f32.mrb[0].mxu0
          %v473 = vadd.f32 0.0, %v472
          %v474 = vpop.f32.mrb[0].mxu0
          %v475 = vpop.f32.mrb[0].mxu0
          %v476 = vadd.f32 0.0, %v475
          %v477 = vpop.f32.mrb[0].mxu0
          %478 = vmatprep.mubr.bf16.mxu0 0
          %479 = vmatmul.mubr.bf16.gmra.mrb[0].mxu0 %v375
          %v480 = vpop.f32.mrb[0].mxu0
          %v481 = vadd.f32 0.0, %v480
          %v482 = vpop.f32.mrb[0].mxu0
          %v483 = vpop.f32.mrb[0].mxu0
          %v484 = vadd.f32 0.0, %v483
          %v485 = vpop.f32.mrb[0].mxu0
          %486 = vmatprep.mubr.bf16.mxu0 0
          %487 = vmatmul.mubr.bf16.gmra.mrb[0].mxu0 %v376
          %v488 = vpop.f32.mrb[0].mxu0
          %v489 = vadd.f32 0.0, %v488
          %v490 = vpop.f32.mrb[0].mxu0
          %v491 = vpop.f32.mrb[0].mxu0
          %v492 = vadd.f32 0.0, %v491
          %v493 = vpop.f32.mrb[0].mxu0
          %494 = vmatprep.mubr.bf16.mxu0 0
          %495 = vmatmul.mubr.bf16.gmra.mrb[0].mxu0 %v377
          %v496 = vpop.f32.mrb[0].mxu0
          %v497 = vadd.f32 0.0, %v496
          %v498 = vpop.f32.mrb[0].mxu0
          %v499 = vpop.f32.mrb[0].mxu0
          %v500 = vadd.f32 0.0, %v499
          %v501 = vpop.f32.mrb[0].mxu0
          %502 = vmatprep.mubr.bf16.mxu0 0
          %503 = vmatmul.mubr.bf16.gmra.mrb[0].mxu0 %v378
          %v504 = vpop.f32.mrb[0].mxu0
          %v505 = vadd.f32 0.0, %v504
          %v506 = vpop.f32.mrb[0].mxu0
          %v507 = vpop.f32.mrb[0].mxu0
          %v508 = vadd.f32 0.0, %v507
          %v509 = vpop.f32.mrb[0].mxu0
          %510 = vmatprep.mubr.bf16.mxu0 0
          %511 = vmatmul.mubr.bf16.gmra.mrb[0].mxu0 %v379
          %v512 = vpop.f32.mrb[0].mxu0
          %v513 = vadd.f32 0.0, %v512
          %v514 = vpop.f32.mrb[0].mxu0
          %v515 = vpop.f32.mrb[0].mxu0
          %v516 = vadd.f32 0.0, %v515
          %v517 = vpop.f32.mrb[0].mxu0
          %518 = vmatprep.mubr.bf16.mxu0 0
          %519 = vmatmul.mubr.bf16.gmra.mrb[0].mxu0 %v380
          %v520 = vpop.f32.mrb[0].mxu0
          %v521 = vadd.f32 0.0, %v520
          %v522 = vpop.f32.mrb[0].mxu0
          %v523 = vpop.f32.mrb[0].mxu0
          %v524 = vadd.f32 0.0, %v523
          %v525 = vpop.f32.mrb[0].mxu0
          %526 = vmatprep.mubr.bf16.mxu0 0
          %527 = vmatmul.mubr.bf16.gmra.mrb[0].mxu0 %v381
          %v528 = vpop.f32.mrb[0].mxu0
          %v529 = vadd.f32 0.0, %v528
          %v530 = vpop.f32.mrb[0].mxu0
          %v531 = vpop.f32.mrb[0].mxu0
          %v532 = vadd.f32 0.0, %v531
          %v533 = vpop.f32.mrb[0].mxu0
          %534 = vdwg.mxu0
          %v535 = vmul.f32 %v473, %v473
          %v536 = vmul.f32 %v476, %v476
          %v537 = vmul.f32 %v481, %v481
          %v538 = vmul.f32 %v484, %v484
          %v539 = vmul.f32 %v489, %v489
          %v540 = vmul.f32 %v492, %v492
          %v541 = vmul.f32 %v497, %v497
          %v542 = vmul.f32 %v500, %v500
          %v543 = vmul.f32 %v505, %v505
          %v544 = vmul.f32 %v508, %v508
          %v545 = vmul.f32 %v513, %v513
          %v546 = vmul.f32 %v516, %v516
          %v547 = vmul.f32 %v521, %v521
          %v548 = vmul.f32 %v524, %v524
          %v549 = vmul.f32 %v529, %v529
          %v550 = vmul.f32 %v532, %v532
          %551 = vadd.xlane.f32.xlu0 %v535
          %v552 = vpop.xlane.xlu0 %551
          %553 = vadd.xlane.f32.xlu0 %v536
          %v554 = vpop.xlane.xlu0 %553
          %555 = vadd.xlane.f32.xlu0 %v537
          %v556 = vpop.xlane.xlu0 %555
          %557 = vadd.xlane.f32.xlu0 %v538
          %v558 = vpop.xlane.xlu0 %557
          %559 = vadd.xlane.f32.xlu0 %v539
          %v560 = vpop.xlane.xlu0 %559
          %561 = vadd.xlane.f32.xlu0 %v540
          %v562 = vpop.xlane.xlu0 %561
          %563 = vadd.xlane.f32.xlu0 %v541
          %v564 = vpop.xlane.xlu0 %563
          %565 = vadd.xlane.f32.xlu0 %v542
          %v566 = vpop.xlane.xlu0 %565
          %567 = vadd.xlane.f32.xlu0 %v543
          %v568 = vpop.xlane.xlu0 %567
          %569 = vadd.xlane.f32.xlu0 %v544
          %v570 = vpop.xlane.xlu0 %569
          %571 = vadd.xlane.f32.xlu0 %v545
          %v572 = vpop.xlane.xlu0 %571
          %573 = vadd.xlane.f32.xlu0 %v546
          %v574 = vpop.xlane.xlu0 %573
          %575 = vadd.xlane.f32.xlu0 %v547
          %v576 = vpop.xlane.xlu0 %575
          %577 = vadd.xlane.f32.xlu0 %v548
          %v578 = vpop.xlane.xlu0 %577
          %579 = vadd.xlane.f32.xlu0 %v549
          %v580 = vpop.xlane.xlu0 %579
          %581 = vadd.xlane.f32.xlu0 %v550
          %v582 = vpop.xlane.xlu0 %581
          %v583 = vadd.f32 %v552, 1e-12
          %v584 = vadd.f32 %v554, 1e-12
          %v585 = vadd.f32 %v556, 1e-12
          %v586 = vadd.f32 %v558, 1e-12
          %v587 = vadd.f32 %v560, 1e-12
          %v588 = vadd.f32 %v562, 1e-12
          %v589 = vadd.f32 %v564, 1e-12
          %v590 = vadd.f32 %v566, 1e-12
          %v591 = vadd.f32 %v568, 1e-12
          %v592 = vadd.f32 %v570, 1e-12
          %v593 = vadd.f32 %v572, 1e-12
          %v594 = vadd.f32 %v574, 1e-12
          %v595 = vadd.f32 %v576, 1e-12
          %v596 = vadd.f32 %v578, 1e-12
          %v597 = vadd.f32 %v580, 1e-12
          %v598 = vadd.f32 %v582, 1e-12
          %v599 = vrsqrt.pop %v583
          %v600 = vrsqrt.pop %v584
          %v601 = vrsqrt.pop %v585
          %v602 = vrsqrt.pop %v586
          %v603 = vrsqrt.pop %v587
          %v604 = vrsqrt.pop %v588
          %v605 = vrsqrt.pop %v589
          %v606 = vrsqrt.pop %v590
          %v607 = vrsqrt.pop %v591
          %v608 = vrsqrt.pop %v592
          %v609 = vrsqrt.pop %v593
          %v610 = vrsqrt.pop %v594
          %v611 = vrsqrt.pop %v595
          %v612 = vrsqrt.pop %v596
          %v613 = vrsqrt.pop %v597
          %v614 = vrsqrt.pop %v598
          %v615 = vmul.f32 %v473, %v599
          %v616 = vmul.f32 %v476, %v600
          %v617 = vmul.f32 %v481, %v601
          %v618 = vmul.f32 %v484, %v602
          %v619 = vmul.f32 %v489, %v603
          %v620 = vmul.f32 %v492, %v604
          %v621 = vmul.f32 %v497, %v605
          %v622 = vmul.f32 %v500, %v606
          %v623 = vmul.f32 %v505, %v607
          %v624 = vmul.f32 %v508, %v608
          %v625 = vmul.f32 %v513, %v609
          %v626 = vmul.f32 %v516, %v610
          %v627 = vmul.f32 %v521, %v611
          %v628 = vmul.f32 %v524, %v612
          %v629 = vmul.f32 %v529, %v613
          %v630 = vmul.f32 %v532, %v614
          %v631 = vpack.c.bf16 %v616, %v615
          %v632 = vpack.c.bf16 %v618, %v617
          %v633 = vpack.c.bf16 %v620, %v619
          %v634 = vpack.c.bf16 %v622, %v621
          %v635 = vpack.c.bf16 %v624, %v623
          %v636 = vpack.c.bf16 %v626, %v625
          %v637 = vpack.c.bf16 %v628, %v627
          %v638 = vpack.c.bf16 %v630, %v629
          %639 = vxpose.xlu0.c.b16.start [1/8] %v631, 128
          %640 = vxpose.xlu0.c.b16.cont [2/8] %v632, 128
          %641 = vxpose.xlu0.c.b16.cont [3/8] %v633, 128
          %642 = vxpose.xlu0.c.b16.cont [4/8] %v634, 128
          %643 = vxpose.xlu0.c.b16.cont [5/8] %v635, 128
          %644 = vxpose.xlu0.c.b16.cont [6/8] %v636, 128
          %645 = vxpose.xlu0.c.b16.cont [7/8] %v637, 128
          %646 = vxpose.xlu0.c.b16.end [8/8] %v638, 128
          %v647 = vpop.trf.xlu0
          %v648 = vpop.trf.xlu0
          %v649 = vpop.trf.xlu0
          %v650 = vpop.trf.xlu0
          %v651 = vpop.trf.xlu0
          %v652 = vpop.trf.xlu0
          %v653 = vpop.trf.xlu0
          %v654 = vpop.trf.xlu0
          %655 = vst [vmem:[#allocation3] sm:$0xff] %v647
          %656 = vst [vmem:[#allocation3 + $0x8] sm:$0xff] %v648
          %657 = vst [vmem:[#allocation3 + $0x10] sm:$0xff] %v649
          %658 = vst [vmem:[#allocation3 + $0x18] sm:$0xff] %v650
          %659 = vst [vmem:[#allocation3 + $0x20] sm:$0xff] %v651
          %660 = vst [vmem:[#allocation3 + $0x28] sm:$0xff] %v652
          %661 = vst [vmem:[#allocation3 + $0x30] sm:$0xff] %v653
          %662 = vst [vmem:[#allocation3 + $0x38] sm:$0xff] %v654
        $region60: #{tpu_custom_call.1} parent=39 // pred_fallthru
          _
        %v663 = vld [vmem:[#allocation2] sm:$0xff]
        %v664 = vld [vmem:[#allocation2 + $0x8] sm:$0xff]
        %v665 = vld [vmem:[%s257] sm:$0xff]
        %v666 = vld [vmem:[%s257 + $0x8] sm:$0xff]
        %v667 = vld [vmem:[%s257 + $0x10] sm:$0xff]
        %v668 = vld [vmem:[%s257 + $0x18] sm:$0xff]
        %v669 = vld [vmem:[%s266] sm:$0xf]
        %v670 = vld [vmem:[%s266 + $0x4] sm:$0xf]
        %v671 = vld [vmem:[%s266 + $0x8] sm:$0xf]
        %v672 = vld [vmem:[%s266 + $0xc] sm:$0xf]
        %v673 = vld [vmem:[%s266 + $0x10] sm:$0xf]
        %v674 = vld [vmem:[%s266 + $0x14] sm:$0xf]
        %v675 = vld [vmem:[%s266 + $0x18] sm:$0xf]
        %v676 = vld [vmem:[%s266 + $0x1c] sm:$0xf]
        %v677 = vld [vmem:[%s266 + $0x20] sm:$0xf]
        %v678 = vld [vmem:[%s266 + $0x24] sm:$0xf]
        %v679 = vld [vmem:[%s266 + $0x28] sm:$0xf]
        %v680 = vld [vmem:[%s266 + $0x2c] sm:$0xf]
        %v681 = vld [vmem:[%s266 + $0x30] sm:$0xf]
        %v682 = vld [vmem:[%s266 + $0x34] sm:$0xf]
        %v683 = vld [vmem:[%s266 + $0x38] sm:$0xf]
        %v684 = vld [vmem:[%s266 + $0x3c] sm:$0xf]
        %v685 = vld [vmem:[%s266 + $0x40] sm:$0xf]
        %v686 = vld [vmem:[%s266 + $0x44] sm:$0xf]
        %v687 = vld [vmem:[%s266 + $0x48] sm:$0xf]
        %v688 = vld [vmem:[%s266 + $0x4c] sm:$0xf]
        %v689 = vld [vmem:[%s266 + $0x50] sm:$0xf]
        %v690 = vld [vmem:[%s266 + $0x54] sm:$0xf]
        %v691 = vld [vmem:[%s266 + $0x58] sm:$0xf]
        %v692 = vld [vmem:[%s266 + $0x5c] sm:$0xf]
        %v693 = vld [vmem:[%s266 + $0x60] sm:$0xf]
        %v694 = vld [vmem:[%s266 + $0x64] sm:$0xf]
        %v695 = vld [vmem:[%s266 + $0x68] sm:$0xf]
        %v696 = vld [vmem:[%s266 + $0x6c] sm:$0xf]
        %v697 = vld [vmem:[%s266 + $0x70] sm:$0xf]
        %v698 = vld [vmem:[%s266 + $0x74] sm:$0xf]
        %v699 = vld [vmem:[%s266 + $0x78] sm:$0xf]
        %v700 = vld [vmem:[%s266 + $0x7c] sm:$0xf]
        %v701 = vld [vmem:[%s266 + $0x80] sm:$0xf]
        %v702 = vld [vmem:[%s266 + $0x84] sm:$0xf]
        %v703 = vld [vmem:[%s266 + $0x88] sm:$0xf]
        %v704 = vld [vmem:[%s266 + $0x8c] sm:$0xf]
        %v705 = vld [vmem:[%s266 + $0x90] sm:$0xf]
        %v706 = vld [vmem:[%s266 + $0x94] sm:$0xf]
        %v707 = vld [vmem:[%s266 + $0x98] sm:$0xf]
        %v708 = vld [vmem:[%s266 + $0x9c] sm:$0xf]
        %v709 = vld [vmem:[%s266 + $0xa0] sm:$0xf]
        %v710 = vld [vmem:[%s266 + $0xa4] sm:$0xf]
        %v711 = vld [vmem:[%s266 + $0xa8] sm:$0xf]
        %v712 = vld [vmem:[%s266 + $0xac] sm:$0xf]
        %v713 = vld [vmem:[%s266 + $0xb0] sm:$0xf]
        %v714 = vld [vmem:[%s266 + $0xb4] sm:$0xf]
        %v715 = vld [vmem:[%s266 + $0xb8] sm:$0xf]
        %v716 = vld [vmem:[%s266 + $0xbc] sm:$0xf]
        %v717 = vld [vmem:[%s266 + $0xc0] sm:$0xf]
        %v718 = vld [vmem:[%s266 + $0xc4] sm:$0xf]
        %v719 = vld [vmem:[%s266 + $0xc8] sm:$0xf]
        %v720 = vld [vmem:[%s266 + $0xcc] sm:$0xf]
        %v721 = vld [vmem:[%s266 + $0xd0] sm:$0xf]
        %v722 = vld [vmem:[%s266 + $0xd4] sm:$0xf]
        %v723 = vld [vmem:[%s266 + $0xd8] sm:$0xf]
        %v724 = vld [vmem:[%s266 + $0xdc] sm:$0xf]
        %v725 = vld [vmem:[%s266 + $0xe0] sm:$0xf]
        %v726 = vld [vmem:[%s266 + $0xe4] sm:$0xf]
        %v727 = vld [vmem:[%s266 + $0xe8] sm:$0xf]
        %v728 = vld [vmem:[%s266 + $0xec] sm:$0xf]
        %v729 = vld [vmem:[%s266 + $0xf0] sm:$0xf]
        %v730 = vld [vmem:[%s266 + $0xf4] sm:$0xf]
        %v731 = vld [vmem:[%s266 + $0xf8] sm:$0xf]
        %v732 = vld [vmem:[%s266 + $0xfc] sm:$0xf]
        %v737 = vunpack.c.l.b16 %v665
        %v738 = vunpack.c.h.b16 %v665
        %v739 = vunpack.c.l.b16 %v666
        %v740 = vunpack.c.h.b16 %v666
        %v741 = vunpack.c.l.b16 %v667
        %v742 = vunpack.c.h.b16 %v667
        %v743 = vunpack.c.l.b16 %v668
        %v744 = vunpack.c.h.b16 %v668
        %v745 = vpack.c.b16 %v741, %v737
        %v746 = vpack.c.b16 %v742, %v738
        %v747 = vpack.c.b16 %v743, %v739
        %v748 = vpack.c.b16 %v744, %v740
        %v817 = vunpack.c.l.b16 %v669
        %v818 = vunpack.c.l.b16 %v670
        %v819 = vunpack.c.l.b16 %v671
        %v820 = vunpack.c.l.b16 %v672
        %v821 = vunpack.c.l.b16 %v673
        %v822 = vunpack.c.l.b16 %v674
        %v823 = vunpack.c.l.b16 %v675
        %v824 = vunpack.c.l.b16 %v676
        %v825 = vunpack.c.l.b16 %v677
        %v826 = vunpack.c.l.b16 %v678
        %v827 = vunpack.c.l.b16 %v679
        %v828 = vunpack.c.l.b16 %v680
        %v829 = vunpack.c.l.b16 %v681
        %v830 = vunpack.c.l.b16 %v682
        %v831 = vunpack.c.l.b16 %v683
        %v832 = vunpack.c.l.b16 %v684
        %v833 = vunpack.c.l.b16 %v685
        %v834 = vunpack.c.l.b16 %v686
        %v835 = vunpack.c.l.b16 %v687
        %v836 = vunpack.c.l.b16 %v688
        %v837 = vunpack.c.l.b16 %v689
        %v838 = vunpack.c.l.b16 %v690
        %v839 = vunpack.c.l.b16 %v691
        %v840 = vunpack.c.l.b16 %v692
        %v841 = vunpack.c.l.b16 %v693
        %v842 = vunpack.c.l.b16 %v694
        %v843 = vunpack.c.l.b16 %v695
        %v844 = vunpack.c.l.b16 %v696
        %v845 = vunpack.c.l.b16 %v697
        %v846 = vunpack.c.l.b16 %v698
        %v847 = vunpack.c.l.b16 %v699
        %v848 = vunpack.c.l.b16 %v700
        %v849 = vunpack.c.l.b16 %v701
        %v850 = vunpack.c.l.b16 %v702
        %v851 = vunpack.c.l.b16 %v703
        %v852 = vunpack.c.l.b16 %v704
        %v853 = vunpack.c.l.b16 %v705
        %v854 = vunpack.c.l.b16 %v706
        %v855 = vunpack.c.l.b16 %v707
        %v856 = vunpack.c.l.b16 %v708
        %v857 = vunpack.c.l.b16 %v709
        %v858 = vunpack.c.l.b16 %v710
        %v859 = vunpack.c.l.b16 %v711
        %v860 = vunpack.c.l.b16 %v712
        %v861 = vunpack.c.l.b16 %v713
        %v862 = vunpack.c.l.b16 %v714
        %v863 = vunpack.c.l.b16 %v715
        %v864 = vunpack.c.l.b16 %v716
        %v865 = vunpack.c.l.b16 %v717
        %v866 = vunpack.c.l.b16 %v718
        %v867 = vunpack.c.l.b16 %v719
        %v868 = vunpack.c.l.b16 %v720
        %v869 = vunpack.c.l.b16 %v721
        %v870 = vunpack.c.l.b16 %v722
        %v871 = vunpack.c.l.b16 %v723
        %v872 = vunpack.c.l.b16 %v724
        %v873 = vunpack.c.l.b16 %v725
        %v874 = vunpack.c.l.b16 %v726
        %v875 = vunpack.c.l.b16 %v727
        %v876 = vunpack.c.l.b16 %v728
        %v877 = vunpack.c.l.b16 %v729
        %v878 = vunpack.c.l.b16 %v730
        %v879 = vunpack.c.l.b16 %v731
        %v880 = vunpack.c.l.b16 %v732
        %v881 = vpack.c.b16 %v818, %v817
        %v882 = vpack.c.b16 %v820, %v819
        %v883 = vpack.c.b16 %v822, %v821
        %v884 = vpack.c.b16 %v824, %v823
        %v885 = vpack.c.b16 %v826, %v825
        %v886 = vpack.c.b16 %v828, %v827
        %v887 = vpack.c.b16 %v830, %v829
        %v888 = vpack.c.b16 %v832, %v831
        %v889 = vpack.c.b16 %v834, %v833
        %v890 = vpack.c.b16 %v836, %v835
        %v891 = vpack.c.b16 %v838, %v837
        %v892 = vpack.c.b16 %v840, %v839
        %v893 = vpack.c.b16 %v842, %v841
        %v894 = vpack.c.b16 %v844, %v843
        %v895 = vpack.c.b16 %v846, %v845
        %v896 = vpack.c.b16 %v848, %v847
        %v897 = vpack.c.b16 %v850, %v849
        %v898 = vpack.c.b16 %v852, %v851
        %v899 = vpack.c.b16 %v854, %v853
        %v900 = vpack.c.b16 %v856, %v855
        %v901 = vpack.c.b16 %v858, %v857
        %v902 = vpack.c.b16 %v860, %v859
        %v903 = vpack.c.b16 %v862, %v861
        %v904 = vpack.c.b16 %v864, %v863
        %v905 = vpack.c.b16 %v866, %v865
        %v906 = vpack.c.b16 %v868, %v867
        %v907 = vpack.c.b16 %v870, %v869
        %v908 = vpack.c.b16 %v872, %v871
        %v909 = vpack.c.b16 %v874, %v873
        %v910 = vpack.c.b16 %v876, %v875
        %v911 = vpack.c.b16 %v878, %v877
        %v912 = vpack.c.b16 %v880, %v879
        %945 = vmatprep.subr.bf16.mxu0 0
        %946 = vmatpush1.bf16.msra.mxu0 %v881
        %947 = vmatprep.subr.bf16.mxu0 0
        %948 = vmatpush1.bf16.msra.mxu0 %v882
        %949 = vmatprep.subr.bf16.mxu0 0
        %950 = vmatpush1.bf16.msra.mxu0 %v883
        %951 = vmatprep.subr.bf16.mxu0 0
        %952 = vmatpush1.bf16.msra.mxu0 %v884
        %953 = vmatprep.subr.bf16.mxu0 0
        %954 = vmatpush1.bf16.msra.mxu0 %v885
        %955 = vmatprep.subr.bf16.mxu0 0
        %956 = vmatpush1.bf16.msra.mxu0 %v886
        %957 = vmatprep.subr.bf16.mxu0 0
        %958 = vmatpush1.bf16.msra.mxu0 %v887
        %959 = vmatprep.subr.bf16.mxu0 0
        %960 = vmatpush1.bf16.msra.mxu0 %v888
        %961 = vmatprep.subr.bf16.mxu0 0
        %962 = vmatpush1.bf16.msra.mxu0 %v889
        %963 = vmatprep.subr.bf16.mxu0 0
        %964 = vmatpush1.bf16.msra.mxu0 %v890
        %965 = vmatprep.subr.bf16.mxu0 0
        %966 = vmatpush1.bf16.msra.mxu0 %v891
        %967 = vmatprep.subr.bf16.mxu0 0
        %968 = vmatpush1.bf16.msra.mxu0 %v892
        %969 = vmatprep.subr.bf16.mxu0 0
        %970 = vmatpush1.bf16.msra.mxu0 %v893
        %971 = vmatprep.subr.bf16.mxu0 0
        %972 = vmatpush1.bf16.msra.mxu0 %v894
        %973 = vmatprep.subr.bf16.mxu0 0
        %974 = vmatpush1.bf16.msra.mxu0 %v895
        %975 = vmatprep.subr.bf16.mxu0 0
        %976 = vmatpush1.bf16.msra.mxu0 %v896
        %977 = vmatprep.mubr.bf16.mxu0 %v746
        %978 = vmatmul.mubr.bf16.gmra.mrb[0].mxu0 %v745
        %v979 = vpop.f32.mrb[0].mxu0
        %v980 = vadd.f32 0.0, %v979
        %v981 = vpop.f32.mrb[0].mxu0
        %v982 = vpop.f32.mrb[0].mxu0
        %v983 = vadd.f32 0.0, %v982
        %v984 = vpop.f32.mrb[0].mxu0
        %985 = vdwg.mxu0
        %986 = vmatprep.subr.bf16.mxu0 0
        %987 = vmatpush1.bf16.msra.mxu0 %v897
        %988 = vmatprep.subr.bf16.mxu0 0
        %989 = vmatpush1.bf16.msra.mxu0 %v898
        %990 = vmatprep.subr.bf16.mxu0 0
        %991 = vmatpush1.bf16.msra.mxu0 %v899
        %992 = vmatprep.subr.bf16.mxu0 0
        %993 = vmatpush1.bf16.msra.mxu0 %v900
        %994 = vmatprep.subr.bf16.mxu0 0
        %995 = vmatpush1.bf16.msra.mxu0 %v901
        %996 = vmatprep.subr.bf16.mxu0 0
        %997 = vmatpush1.bf16.msra.mxu0 %v902
        %998 = vmatprep.subr.bf16.mxu0 0
        %999 = vmatpush1.bf16.msra.mxu0 %v903
        %1000 = vmatprep.subr.bf16.mxu0 0
        %1001 = vmatpush1.bf16.msra.mxu0 %v904
        %1002 = vmatprep.subr.bf16.mxu0 0
        %1003 = vmatpush1.bf16.msra.mxu0 %v905
        %1004 = vmatprep.subr.bf16.mxu0 0
        %1005 = vmatpush1.bf16.msra.mxu0 %v906
        %1006 = vmatprep.subr.bf16.mxu0 0
        %1007 = vmatpush1.bf16.msra.mxu0 %v907
        %1008 = vmatprep.subr.bf16.mxu0 0
        %1009 = vmatpush1.bf16.msra.mxu0 %v908
        %1010 = vmatprep.subr.bf16.mxu0 0
        %1011 = vmatpush1.bf16.msra.mxu0 %v909
        %1012 = vmatprep.subr.bf16.mxu0 0
        %1013 = vmatpush1.bf16.msra.mxu0 %v910
        %1014 = vmatprep.subr.bf16.mxu0 0
        %1015 = vmatpush1.bf16.msra.mxu0 %v911
        %1016 = vmatprep.subr.bf16.mxu0 0
        %1017 = vmatpush1.bf16.msra.mxu0 %v912
        %1018 = vmatprep.mubr.bf16.mxu0 %v748
        %1019 = vmatmul.mubr.bf16.gmra.mrb[0].mxu0 %v747
        %v1020 = vpop.f32.mrb[0].mxu0
        %v1021 = vadd.f32 %v980, %v1020
        %v1022 = vpop.f32.mrb[0].mxu0
        %v1023 = vpop.f32.mrb[0].mxu0
        %v1024 = vadd.f32 %v983, %v1023
        %v1025 = vpop.f32.mrb[0].mxu0
        %1026 = vdwg.mxu0
        %v1027 = vadd.f32 %v663, %v1021
        %v1028 = vadd.f32 %v664, %v1024
        %1029 = vst [vmem:[#allocation2] sm:$0xff] %v1027
        %1030 = vst [vmem:[#allocation2 + $0x8] sm:$0xff] %v1028
        %p1031 = scmp.eq.s32.totalorder %s25, 1
        // Predicated region
        $region61: #{tpu_custom_call.1} parent=39 // pred_check
          %p1032 = pneg %p1031
        $region62: #{tpu_custom_call.1} parent=39 // pred_check_branch
          %1034 = sbr.rel (%p1032) target = $region64
        $region63: #{tpu_custom_call.1} parent=39 // pred_region
          %v1035 = vld [vmem:[#allocation2] sm:$0xff]
          %v1036 = vld [vmem:[#allocation2 + $0x8] sm:$0xff]
          %v1037 = vmul.f32 %v1035, %v1035
          %v1038 = vmul.f32 %v1036, %v1036
          %1039 = vadd.xlane.f32.xlu0 %v1037
          %v1040 = vpop.xlane.xlu0 %1039
          %1041 = vadd.xlane.f32.xlu0 %v1038
          %v1042 = vpop.xlane.xlu0 %1041
          %v1043 = vadd.f32 %v1040, 1e-12
          %v1044 = vadd.f32 %v1042, 1e-12
          %v1045 = vrsqrt.pop %v1043
          %v1046 = vrsqrt.pop %v1044
          %v1047 = vmul.f32 %v1035, %v1045
          %v1048 = vmul.f32 %v1036, %v1046
          %s1049 = sld [smem:[#allocation4]]
          %v1050 = vstv %s1049
          %v1051 = vmul.f32 %v1050, 1.442695
          %v1052 = vpow.pop %v1051
          %s1053 = vtos %v1052
          %v1054 = vpack.c.bf16 %v1048, %v1047
          %v1055 = vld [vmem:[#allocation3] sm:$0xff]
          %v1056 = vld [vmem:[#allocation3 + $0x8] sm:$0xff]
          %v1057 = vld [vmem:[#allocation3 + $0x10] sm:$0xff]
          %v1058 = vld [vmem:[#allocation3 + $0x18] sm:$0xff]
          %v1059 = vld [vmem:[#allocation3 + $0x20] sm:$0xff]
          %v1060 = vld [vmem:[#allocation3 + $0x28] sm:$0xff]
          %v1061 = vld [vmem:[#allocation3 + $0x30] sm:$0xff]
          %v1062 = vld [vmem:[#allocation3 + $0x38] sm:$0xff]
          %1063 = vmatprep.subr.bf16.mxu0 0
          %1064 = vmatpush1.bf16.msra.mxu0 %v1055
          %1065 = vmatprep.subr.bf16.mxu0 0
          %1066 = vmatpush1.bf16.msra.mxu0 %v1056
          %1067 = vmatprep.subr.bf16.mxu0 0
          %1068 = vmatpush1.bf16.msra.mxu0 %v1057
          %1069 = vmatprep.subr.bf16.mxu0 0
          %1070 = vmatpush1.bf16.msra.mxu0 %v1058
          %1071 = vmatprep.subr.bf16.mxu0 0
          %1072 = vmatpush1.bf16.msra.mxu0 %v1059
          %1073 = vmatprep.subr.bf16.mxu0 0
          %1074 = vmatpush1.bf16.msra.mxu0 %v1060
          %1075 = vmatprep.subr.bf16.mxu0 0
          %1076 = vmatpush1.bf16.msra.mxu0 %v1061
          %1077 = vmatprep.subr.bf16.mxu0 0
          %1078 = vmatpush1.bf16.msra.mxu0 %v1062
          %1079 = vmatprep.subr.bf16.mxu0 0
          %1080 = vmatpush1.bf16.msra.mxu0 0
          %1081 = vmatprep.subr.bf16.mxu0 0
          %1082 = vmatpush1.bf16.msra.mxu0 0
          %1083 = vmatprep.subr.bf16.mxu0 0
          %1084 = vmatpush1.bf16.msra.mxu0 0
          %1085 = vmatprep.subr.bf16.mxu0 0
          %1086 = vmatpush1.bf16.msra.mxu0 0
          %1087 = vmatprep.subr.bf16.mxu0 0
          %1088 = vmatpush1.bf16.msra.mxu0 0
          %1089 = vmatprep.subr.bf16.mxu0 0
          %1090 = vmatpush1.bf16.msra.mxu0 0
          %1091 = vmatprep.subr.bf16.mxu0 0
          %1092 = vmatpush1.bf16.msra.mxu0 0
          %1093 = vmatprep.subr.bf16.mxu0 0
          %1094 = vmatpush1.bf16.msra.mxu0 0
          %1095 = vmatprep.mubr.bf16.mxu0 0
          %1096 = vmatmul.mubr.bf16.gmra.mrb[0].mxu0 %v1054
          %v1097 = vpop.f32.mrb[0].mxu0
          %v1098 = vadd.f32 0.0, %v1097
          %v1099 = vpop.f32.mrb[0].mxu0
          %v1100 = vpop.f32.mrb[0].mxu0
          %v1101 = vadd.f32 0.0, %v1100
          %v1102 = vpop.f32.mrb[0].mxu0
          %1103 = vdwg.mxu0
          %v1104 = vstv %s1053
          %v1105 = vmul.f32 %v1104, %v1098
          %v1106 = vmul.f32 %v1104, %v1101
          %1107 = vst [vmem:[#allocation13] sm:$0xff] %v1105
          %1108 = vst [vmem:[#allocation13 + $0x8] sm:$0xff] %v1106
        $region64: #{tpu_custom_call.1} parent=39 // pred_fallthru
          _
        // Predicated region
        $region65: #{tpu_custom_call.1} parent=39 // pred_check
          %p1109 = pneg %p153
        $region66: #{tpu_custom_call.1} parent=39 // pred_check_branch
          %1111 = sbr.rel (%p1109) target = $region68
        $region67: #{tpu_custom_call.1} parent=39 // pred_region
          %s1113 = ssub.s32 256, 256
          %1114 = vsyncadd [#allocation7], %s1113
          %s1115 = sshll.u32 [#allocation13], 4
          %s1116 = int_to_ptr.vmem [resolvable:$true] %s1115
          %1121 = dma.vmem_to_hbm [thread:$0]  %s1116, 256, %s5, [#allocation7], 128, 128, 8
        $region68: #{tpu_custom_call.1} parent=39 // pred_fallthru
          _
        // Predicated region
        $region69: #{tpu_custom_call.1} parent=39 // pred_check
          %p1122 = pneg %p153
        $region70: #{tpu_custom_call.1} parent=39 // pred_check_branch
          %1124 = sbr.rel (%p1122) target = $region72
        $region71: #{tpu_custom_call.1} parent=39 // pred_region
          %1125 = dma.done [#allocation7], 256
        $region72: #{tpu_custom_call.1} parent=39 // pred_fallthru
          _
      $region40: #{tpu_custom_call.1} parent=5 // pred_fallthru
        _
      %p1126 = scmp.le.s32.totalorder 2, %s20
      // Predicated region
      $region73: #{tpu_custom_call.1} parent=5 // pred_check
        %p1127 = pneg %p1126
      $region74: #{tpu_custom_call.1} parent=5 // pred_check_branch
        %1129 = sbr.rel (%p1127) target = $region76
      $region75: #{tpu_custom_call.1} parent=5 // pred_region
        %s1130 = ssub.s32 %s20, 2
      $region76: #{tpu_custom_call.1} parent=5 // pred_fallthru
        _
    $region6: #{tpu_custom_call.1} parent=1 // loop_footer
      %s24 = sadd.s32 1, %s20
    $region7: #{tpu_custom_call.1} parent=1 // loop_footer_branch
      %19 = sbr.rel target = $region3
    $region8: #{tpu_custom_call.1} parent=1 // loop_exit
      _
    %1131 = vsyncpa [#allocation6], 1
    %s1132 = scalar_lea.sflag [#allocation6], 1
    %1133 = vsyncpa %s1132, 1
    %1134 = vsyncpa [#allocation9], 1
    %s1135 = scalar_lea.sflag [#allocation9], 1
    %1136 = vsyncpa %s1135, 1
    %1137 = vsyncpa [#allocation12], 1
    %1138 = vsyncpa [#allocation7], 1
    %s1139 = scalar_lea.sflag [#allocation7], 1
    %1140 = vsyncpa %s1139, 1

</llo_original>
